<compile_context>
chip_gen: v6e
topology: v6e:2x2x1
jax: 0.10.0
libtpu: 0.0.40
codegen_flags: <defaults>
</compile_context>

<pallas_src>
import jax
import jax.numpy as jnp
from jax.experimental import pallas as pl
from jax.experimental.pallas import tpu as pltpu


def _round_up(x: int, m: int) -> int:
    return ((x + m - 1) // m) * m


def _cdiv(a: int, b: int) -> int:
    return -(-a // b)


# ----------------------------------------------------------------------------
# Kernel
# ----------------------------------------------------------------------------
def time_embedding_kernel(x_ref, w_ref, b_ref, o_ref):
    # x_ref: (tb, D) input dtype; w_ref: (D, tn) MXU operand dtype (pre-cast);
    # b_ref: (1, tn) f32; o_ref: (tb, tn) out dtype.
    xf = x_ref[...].astype(jnp.float32)                        # SiLU math in f32
    sig = pl.reciprocal(1.0 + jnp.exp(-xf), approx=False)      # exact sigmoid
    silu = (xf * sig).astype(w_ref.dtype)                      # cast small tile only
    acc = jnp.dot(silu, w_ref[...], preferred_element_type=jnp.float32)  # MXU
    o_ref[...] = (acc + b_ref[...]).astype(o_ref.dtype)


# ----------------------------------------------------------------------------
# One-time parameter preparation (do this at model init, not per call)
# ----------------------------------------------------------------------------
def prepare_time_embedding_params(weight, bias, mxu_dtype=jnp.bfloat16):
    """Pad n_out to a lane multiple, transpose to (D, Np), cast to MXU dtype."""
    N, D = weight.shape
    Np = _round_up(N, 128)
    w = weight
    if Np != N:
        w = jnp.pad(w, ((0, Np - N), (0, 0)))
    w_t = jnp.transpose(w).astype(mxu_dtype)          # (D, Np), stored in HBM
    b = bias.astype(jnp.float32)
    if Np != N:
        b = jnp.pad(b, (0, Np - N))
    return w_t, b.reshape(1, Np), N


# ----------------------------------------------------------------------------
# Per-call wrapper
# ----------------------------------------------------------------------------
def time_embedding(x, w_t, b2d, n_out, *, max_tb=256,
                   weight_vmem_budget=24 << 20):
    """x: (B, D); w_t: (D, Np) prepped weight; b2d: (1, Np) f32 bias."""
    B, D = x.shape
    D2, Np = w_t.shape
    assert D2 == D, (w_t.shape, x.shape)
    assert b2d.shape == (1, Np), b2d.shape
    out_dtype = x.dtype

    # --- batch tiling: balanced tiles, <8 rows of padding waste per tile ---
    n_b_tiles = _cdiv(B, max_tb)
    tb = _round_up(_cdiv(B, n_b_tiles), 8)
    Bp = n_b_tiles * tb
    xp = x if Bp == B else jnp.pad(x, ((0, Bp - B), (0, 0)))

    # --- N tiling: keep weight resident (single-buffered) if it fits ---
    w_itemsize = jnp.dtype(w_t.dtype).itemsize
    weight_resident = Np * D * w_itemsize <= weight_vmem_budget
    if weight_resident:
        tn = Np
    else:
        # Largest multiple of 128 dividing Np whose double-buffered block fits.
        tn = 128
        for c in range(Np // 128, 0, -1):
            if (Np // 128) % c == 0 and 2 * (c * 128) * D * w_itemsize <= weight_vmem_budget:
                tn = c * 128
                break
    n_n_tiles = Np // tn
    grid = (n_b_tiles, n_n_tiles)

    # --- VMEM limit sized to the actual resident buffers ---
    w_bufs = 1 if weight_resident else 2
    x_itemsize = jnp.dtype(x.dtype).itemsize
    o_itemsize = jnp.dtype(out_dtype).itemsize
    vmem_need = (w_bufs * tn * D * w_itemsize      # weight block(s)
                 + 2 * tb * D * x_itemsize         # double-buffered x tiles
                 + 2 * tb * tn * o_itemsize        # double-buffered out tiles
                 + w_bufs * tn * 4)                # bias block(s), f32
    vmem_limit = min(max(int(vmem_need * 1.5) + (4 << 20), 8 << 20), 64 << 20)

    if weight_resident:
        # Invariant blocks: single buffer, no redundant DMA / VMEM waste.
        w_spec = pl.BlockSpec((D, tn), lambda i, j: (0, j),
                              pipeline_mode=pl.Buffered(1))
        b_spec = pl.BlockSpec((1, tn), lambda i, j: (0, j),
                              pipeline_mode=pl.Buffered(1))
    else:
        # Streamed weight columns: keep default double buffering for overlap.
        w_spec = pl.BlockSpec((D, tn), lambda i, j: (0, j))
        b_spec = pl.BlockSpec((1, tn), lambda i, j: (0, j))

    cost = pl.CostEstimate(
        flops=2 * Bp * D * Np,
        transcendentals=2 * Bp * D,   # exp + reciprocal per element
        bytes_accessed=(Bp * D * x_itemsize + Np * D * w_itemsize
                        + Np * 4 + Bp * Np * o_itemsize),
    )

    out = pl.pallas_call(
        time_embedding_kernel,
        out_shape=jax.ShapeDtypeStruct((Bp, Np), out_dtype),
        grid_spec=pltpu.PrefetchScalarGridSpec(
            num_scalar_prefetch=0,
            grid=grid,
            in_specs=[
                pl.BlockSpec((tb, D), lambda i, j: (i, 0)),   # x tile
                w_spec,                                        # weight columns
                b_spec,                                        # bias columns
            ],
            out_specs=pl.BlockSpec((tb, tn), lambda i, j: (i, j)),
        ),
        compiler_params=pltpu.CompilerParams(
            dimension_semantics=("parallel", "parallel"),
            vmem_limit_bytes=vmem_limit),
        cost_estimate=cost,
    )(xp, w_t, b2d)

    # Slice away batch / lane padding.
    return out[:B, :n_out]


def time_embedding_apply(x, weight, bias, *, mxu_dtype=jnp.bfloat16):
    """Convenience: prep + call (prep should normally be done once at init)."""
    w_t, b2d, n_out = prepare_time_embedding_params(weight, bias, mxu_dtype)
    return time_embedding(x, w_t, b2d, n_out)


def time_embedding_ref(x, weight, bias):
    xf = x.astype(jnp.float32)
    silu = xf * jax.nn.sigmoid(xf)
    return (silu @ weight.astype(jnp.float32).T
            + bias.astype(jnp.float32)).astype(x.dtype)


if __name__ == "__main__":
    # Small shapes consistent with the module: t_emb_dim=128, n_out=64, batch=8
    B, T_EMB_DIM, N_OUT = 8, 128, 64

    key = jax.random.PRNGKey(0)
    kx, kw, kb = jax.random.split(key, 3)

    x = jax.random.normal(kx, (B, T_EMB_DIM), dtype=jnp.float32)
    weight = jax.random.normal(kw, (N_OUT, T_EMB_DIM), dtype=jnp.float32) * 0.02
    bias = jax.random.normal(kb, (N_OUT,), dtype=jnp.float32) * 0.02

    ref = time_embedding_ref(x, weight, bias)

    # bf16 MXU operands (default fast path) -- f32 accumulation, f32 SiLU.
    w_bf16, b2d_bf16, n_out = prepare_time_embedding_params(
        weight, bias, jnp.bfloat16)
    out_bf16 = jax.block_until_ready(time_embedding(x, w_bf16, b2d_bf16, n_out))
    assert out_bf16.shape == (B, N_OUT), out_bf16.shape
    assert jnp.allclose(out_bf16, ref, atol=3e-2, rtol=3e-2), \
        float(jnp.max(jnp.abs(out_bf16 - ref)))

    # f32 MXU operands (opt-in, tight tolerance).
    w_f32, b2d_f32, _ = prepare_time_embedding_params(weight, bias, jnp.float32)
    out_f32 = jax.block_until_ready(time_embedding(x, w_f32, b2d_f32, n_out))
    assert out_f32.shape == (B, N_OUT), out_f32.shape
    assert jnp.allclose(out_f32, ref, atol=1e-3, rtol=1e-3), \
        float(jnp.max(jnp.abs(out_f32 - ref)))

    # Ragged batch (B=5 -> padded to one 8-row tile), reusing prepped params.
    x5 = x[:5]
    out5 = jax.block_until_ready(time_embedding(x5, w_bf16, b2d_bf16, n_out))
    ref5 = time_embedding_ref(x5, weight, bias)
    assert out5.shape == (5, N_OUT), out5.shape
    assert jnp.allclose(out5, ref5, atol=3e-2, rtol=3e-2), \
        float(jnp.max(jnp.abs(out5 - ref5)))

    print("KERNEL_OK")
</pallas_src>

<mosaic_0001>
module attributes {stable_mosaic.version = 11 : i64} {
  func.func @time_embedding_kernel(%arg0: i32, %arg1: i32, %arg2: memref<8x128xf32, #tpu.memory_space<vmem>>, %arg3: memref<128x128xbf16, #tpu.memory_space<vmem>>, %arg4: memref<1x128xf32, #tpu.memory_space<vmem>>, %arg5: memref<8x128xf32, #tpu.memory_space<vmem>>) attributes {dimension_semantics = [#tpu.dimension_semantics<parallel>, #tpu.dimension_semantics<parallel>], iteration_bounds = array<i64: 1, 1>, scalar_prefetch = 0 : i64, scratch_operands = 0 : i64, tpu.core_type = #tpu.core_type<tc>, window_params = [{transform_indices = @transform_0, window_bounds = array<i64: 8, 128>}, {pipeline_mode = #tpu.pipeline_mode<synchronous>, transform_indices = @transform_1, window_bounds = array<i64: 128, 128>}, {pipeline_mode = #tpu.pipeline_mode<synchronous>, transform_indices = @transform_2, window_bounds = array<i64: 1, 128>}, {transform_indices = @transform_3, window_bounds = array<i64: 8, 128>}]} {
    %c0 = arith.constant 0 : index
    %c0_0 = arith.constant 0 : index
    %0 = vector.load %arg2[%c0, %c0_0] : memref<8x128xf32, #tpu.memory_space<vmem>>, vector<8x128xf32>
    %cst = arith.constant 0.000000e+00 : f32
    %1 = vector.broadcast %cst : f32 to vector<8x128xf32>
    %2 = arith.subf %1, %0 : vector<8x128xf32>
    %3 = math.exp %2 : vector<8x128xf32>
    %cst_1 = arith.constant 1.000000e+00 : f32
    %4 = vector.broadcast %cst_1 : f32 to vector<8x128xf32>
    %5 = arith.addf %4, %3 : vector<8x128xf32>
    %6 = tpu.reciprocal %5 : vector<8x128xf32> -> vector<8x128xf32>
    %7 = arith.mulf %0, %6 : vector<8x128xf32>
    %8 = arith.truncf %7 : vector<8x128xf32> to vector<8x128xbf16>
    %c0_2 = arith.constant 0 : index
    %c0_3 = arith.constant 0 : index
    %9 = vector.load %arg3[%c0_2, %c0_3] : memref<128x128xbf16, #tpu.memory_space<vmem>>, vector<128x128xbf16>
    %cst_4 = arith.constant dense<0.000000e+00> : vector<8x128xf32>
    %10 = tpu.matmul %8, %9, %cst_4 {dimension_numbers = #tpu.dot_dimension_numbers<[1], [0], [0], [1], [0, 0, 1, 1], [], []>} : vector<8x128xbf16>, vector<128x128xbf16>, vector<8x128xf32> -> vector<8x128xf32>
    %c0_5 = arith.constant 0 : index
    %c0_6 = arith.constant 0 : index
    %11 = vector.load %arg4[%c0_5, %c0_6] : memref<1x128xf32, #tpu.memory_space<vmem>>, vector<1x128xf32>
    %12 = vector.broadcast %11 : vector<1x128xf32> to vector<8x128xf32>
    %13 = arith.addf %10, %12 : vector<8x128xf32>
    %c0_7 = arith.constant 0 : index
    %c0_8 = arith.constant 0 : index
    %14 = vector.load %arg5[%c0_7, %c0_8] : memref<8x128xf32, #tpu.memory_space<vmem>>, vector<8x128xf32>
    tpu.vector_store %arg5[%c0_7, %c0_8], %13 {strides = array<i32>} : memref<8x128xf32, #tpu.memory_space<vmem>>, vector<8x128xf32>,
    return
  }
  func.func @transform_0(%arg0: i32, %arg1: i32) -> (i32, i32) {
    %c0_i32 = arith.constant 0 : i32
    %c0_i32_0 = arith.constant 0 : i32
    return %arg0, %c0_i32 : i32, i32
  }
  func.func @transform_1(%arg0: i32, %arg1: i32) -> (i32, i32) {
    %c0_i32 = arith.constant 0 : i32
    %c0_i32_0 = arith.constant 0 : i32
    return %c0_i32, %arg1 : i32, i32
  }
  func.func @transform_2(%arg0: i32, %arg1: i32) -> (i32, i32) {
    %c0_i32 = arith.constant 0 : i32
    %c0_i32_0 = arith.constant 0 : i32
    return %c0_i32, %arg1 : i32, i32
  }
  func.func @transform_3(%arg0: i32, %arg1: i32) -> (i32, i32) {
    %c0_i32 = arith.constant 0 : i32
    return %arg0, %arg1 : i32, i32
  }
}

</mosaic_0001>

<llo_original>
// kernel: tpu_custom_call.1
$region0: #{tpu_custom_call.1}
  #allocation0 [shape = 'u32[]', space=smem, size = 0x4, offset = 0x4, fixed_abs, tag = 'smem constant byte address 0x4 - core index']
  #allocation1 [shape = 'u32[144,128]{1,0:T(1,128)}', space=vmem, size = 0x12000, scoped, tag = 'internal scratch']
  %s0 = inlined_call_operand.hbm [shape: f32[8,128], index: 0, kind: input, shape index: {}]
  %s1 = inlined_call_operand.hbm [shape: bf16[128,128], index: 1, kind: input, shape index: {}]
  %s2 = inlined_call_operand.vmem [shape: f32[1,128], index: 2, kind: input, shape index: {}]
  %s3 = inlined_call_operand.hbm [shape: f32[8,128], index: 3, kind: output, shape index: {}]
  %s4 = sld [smem:[#allocation0]]
  $region30: #{tpu_custom_call.1} parent=0
    _
  %s6 = ssub.s32 1, %s4
  %s7 = scalar_select 0, %s6, %s4
  $region1: #{tpu_custom_call.1} parent=0
    #allocation2 [shape = 'u8[4096]{0}', space=vmem, size = 0x1000, scoped, tag = 'input window, operand 0, single buffered']
    #allocation3 [shape = 's32[1]{0}', space=sflag, size = 0x4, scoped, tag = 'scoped memory for tpu_custom_call.1']
    #allocation4 [shape = 's32[1]{0}', space=sflag, size = 0x4, scoped, tag = 'scoped memory for tpu_custom_call.1']
    #allocation5 [shape = 'u8[32768]{0}', space=vmem, size = 0x8000, scoped, tag = 'input window, operand 1, single buffered']
    #allocation6 [shape = 's32[1]{0}', space=sflag, size = 0x4, scoped, tag = 'scoped memory for tpu_custom_call.1']
    #allocation7 [shape = 'u8[4096]{0}', space=vmem, size = 0x1000, scoped, tag = 'output window, operand 0, single buffered']
    %8 = vsyncpa [#allocation3], 0
    %9 = vsyncpa [#allocation6], 0
    %10 = vsyncpa [#allocation4], 0
    // Predicated region
    $region2: #{tpu_custom_call.1} parent=1 // pred_check
      _
    $region3: #{tpu_custom_call.1} parent=1 // pred_check_branch
      %12 = sbr.rel (0) target = $region5
    $region4: #{tpu_custom_call.1} parent=1 // pred_region
      %s14 = ssub.s32 128, 128
      %15 = vsyncadd [#allocation3], %s14
      %s17 = sshll.u32 [#allocation2], 4
      %s18 = int_to_ptr.vmem [resolvable:$true] %s17
      %20 = dma.hbm_to_vmem [thread:$0]  %s0, 128, %s18, [#allocation3]
    $region5: #{tpu_custom_call.1} parent=1 // pred_fallthru
      _
    // Predicated region
    $region6: #{tpu_custom_call.1} parent=1 // pred_check
      _
    $region7: #{tpu_custom_call.1} parent=1 // pred_check_branch
      %22 = sbr.rel (0) target = $region9
    $region8: #{tpu_custom_call.1} parent=1 // pred_region
      %s24 = ssub.s32 1024, 1024
      %25 = vsyncadd [#allocation6], %s24
      %s26 = sshll.u32 [#allocation5], 4
      %s27 = int_to_ptr.vmem [resolvable:$true] %s26
      %32 = dma.hbm_to_vmem [thread:$0]  %s1, 1024, %s27, [#allocation6], 64, 64, 4
    $region9: #{tpu_custom_call.1} parent=1 // pred_fallthru
      _
    // Predicated region
    $region10: #{tpu_custom_call.1} parent=1 // pred_check
      _
    $region11: #{tpu_custom_call.1} parent=1 // pred_check_branch
      %34 = sbr.rel (0) target = $region13
    $region12: #{tpu_custom_call.1} parent=1 // pred_region
      _
    $region13: #{tpu_custom_call.1} parent=1 // pred_fallthru
      _
    // Predicated region
    $region14: #{tpu_custom_call.1} parent=1 // pred_check
      _
    $region15: #{tpu_custom_call.1} parent=1 // pred_check_branch
      %36 = sbr.rel (0) target = $region17
    $region16: #{tpu_custom_call.1} parent=1 // pred_region
      %37 = dma.done [#allocation3], 128
    $region17: #{tpu_custom_call.1} parent=1 // pred_fallthru
      _
    // Predicated region
    $region18: #{tpu_custom_call.1} parent=1 // pred_check
      _
    $region19: #{tpu_custom_call.1} parent=1 // pred_check_branch
      %39 = sbr.rel (0) target = $region21
    $region20: #{tpu_custom_call.1} parent=1 // pred_region
      %40 = dma.done [#allocation6], 1024
    $region21: #{tpu_custom_call.1} parent=1 // pred_fallthru
      _
    %v42 = vld [vmem:[#allocation2] sm:$0xff]
    %v43 = vsub.f32 0.0, %v42
    %v44 = vmul.f32 %v43, 1.442695
    %v45 = vpow.pop %v44
    %v46 = vadd.f32 %v45, 1.0
    %v47 = vrcp.pop %v46
    %v48 = vmul.f32 %v42, %v47
    %v49 = vpack.c.bf16 %v48, %v48
    %v50 = vld [vmem:[#allocation5] sm:$0xf]
    %v51 = vld [vmem:[#allocation5 + $0x4] sm:$0xf]
    %v52 = vld [vmem:[#allocation5 + $0x8] sm:$0xf]
    %v53 = vld [vmem:[#allocation5 + $0xc] sm:$0xf]
    %v54 = vld [vmem:[#allocation5 + $0x10] sm:$0xf]
    %v55 = vld [vmem:[#allocation5 + $0x14] sm:$0xf]
    %v56 = vld [vmem:[#allocation5 + $0x18] sm:$0xf]
    %v57 = vld [vmem:[#allocation5 + $0x1c] sm:$0xf]
    %v58 = vld [vmem:[#allocation5 + $0x20] sm:$0xf]
    %v59 = vld [vmem:[#allocation5 + $0x24] sm:$0xf]
    %v60 = vld [vmem:[#allocation5 + $0x28] sm:$0xf]
    %v61 = vld [vmem:[#allocation5 + $0x2c] sm:$0xf]
    %v62 = vld [vmem:[#allocation5 + $0x30] sm:$0xf]
    %v63 = vld [vmem:[#allocation5 + $0x34] sm:$0xf]
    %v64 = vld [vmem:[#allocation5 + $0x38] sm:$0xf]
    %v65 = vld [vmem:[#allocation5 + $0x3c] sm:$0xf]
    %v66 = vld [vmem:[%s2] sm:$0x1]
    %v68 = vlaneseq
    %v69 = vshrl.u32 %v68, 7
    %v70 = vsub.s32 0, %v69
    %v71 = vrot.slane %v66, %v70
    %v89 = vunpack.c.l.b16 %v50
    %v90 = vunpack.c.l.b16 %v51
    %v91 = vunpack.c.l.b16 %v52
    %v92 = vunpack.c.l.b16 %v53
    %v93 = vunpack.c.l.b16 %v54
    %v94 = vunpack.c.l.b16 %v55
    %v95 = vunpack.c.l.b16 %v56
    %v96 = vunpack.c.l.b16 %v57
    %v97 = vunpack.c.l.b16 %v58
    %v98 = vunpack.c.l.b16 %v59
    %v99 = vunpack.c.l.b16 %v60
    %v100 = vunpack.c.l.b16 %v61
    %v101 = vunpack.c.l.b16 %v62
    %v102 = vunpack.c.l.b16 %v63
    %v103 = vunpack.c.l.b16 %v64
    %v104 = vunpack.c.l.b16 %v65
    %v105 = vpack.c.b16 %v90, %v89
    %v106 = vpack.c.b16 %v92, %v91
    %v107 = vpack.c.b16 %v94, %v93
    %v108 = vpack.c.b16 %v96, %v95
    %v109 = vpack.c.b16 %v98, %v97
    %v110 = vpack.c.b16 %v100, %v99
    %v111 = vpack.c.b16 %v102, %v101
    %v112 = vpack.c.b16 %v104, %v103
    %121 = vmatprep.subr.bf16.mxu0 0
    %122 = vmatpush1.bf16.msra.mxu0 %v112
    %123 = vmatprep.subr.bf16.mxu0 0
    %124 = vmatpush1.bf16.msra.mxu0 %v111
    %125 = vmatprep.subr.bf16.mxu0 0
    %126 = vmatpush1.bf16.msra.mxu0 %v110
    %127 = vmatprep.subr.bf16.mxu0 0
    %128 = vmatpush1.bf16.msra.mxu0 %v109
    %129 = vmatprep.subr.bf16.mxu0 0
    %130 = vmatpush1.bf16.msra.mxu0 %v108
    %131 = vmatprep.subr.bf16.mxu0 0
    %132 = vmatpush1.bf16.msra.mxu0 %v107
    %133 = vmatprep.subr.bf16.mxu0 0
    %134 = vmatpush1.bf16.msra.mxu0 %v106
    %135 = vmatprep.subr.bf16.mxu0 0
    %136 = vmatpush1.bf16.msra.mxu0 %v105
    %137 = vmatprep.subr.bf16.mxu0 0
    %138 = vmatpush2.bf16.msra.mxu0 0
    %139 = vmatprep.subr.bf16.mxu0 0
    %140 = vmatpush2.bf16.msra.mxu0 0
    %141 = vmatprep.subr.bf16.mxu0 0
    %142 = vmatpush2.bf16.msra.mxu0 0
    %143 = vmatprep.subr.bf16.mxu0 0
    %144 = vmatpush2.bf16.msra.mxu0 0
    %145 = vmatprep.subr.bf16.mxu0 0
    %146 = vmatpush2.bf16.msra.mxu0 0
    %147 = vmatprep.subr.bf16.mxu0 0
    %148 = vmatpush2.bf16.msra.mxu0 0
    %149 = vmatprep.subr.bf16.mxu0 0
    %150 = vmatpush2.bf16.msra.mxu0 0
    %151 = vmatprep.subr.bf16.mxu0 0
    %152 = vmatpush2.bf16.msra.mxu0 0
    %153 = vmatprep.mubr.bf16.mxu0 0
    %154 = vmatmul.mubr.bf16.gmra.mxu0 %v49
    %v155 = vpop.f32.mrf.mxu0
    %v156 = vadd.f32 %v71, %v155
    %v157 = vpop.f32.mrf.mxu0
    %v158 = vpop.f32.mrf.mxu0
    %v159 = vpop.f32.mrf.mxu0
    %160 = vdwg.mxu0
    %161 = vst [vmem:[#allocation7] sm:$0xff] %v156
    // Predicated region
    $region22: #{tpu_custom_call.1} parent=1 // pred_check
      _
    $region23: #{tpu_custom_call.1} parent=1 // pred_check_branch
      %163 = sbr.rel (0) target = $region25
    $region24: #{tpu_custom_call.1} parent=1 // pred_region
      %s165 = ssub.s32 128, 128
      %166 = vsyncadd [#allocation4], %s165
      %s168 = sshll.u32 [#allocation7], 4
      %s169 = int_to_ptr.vmem [resolvable:$true] %s168
      %171 = dma.vmem_to_hbm [thread:$0]  %s169, 128, %s3, [#allocation4]
    $region25: #{tpu_custom_call.1} parent=1 // pred_fallthru
      _
    // Predicated region
    $region26: #{tpu_custom_call.1} parent=1 // pred_check
      _
    $region27: #{tpu_custom_call.1} parent=1 // pred_check_branch
      %173 = sbr.rel (0) target = $region29
    $region28: #{tpu_custom_call.1} parent=1 // pred_region
      %174 = dma.done [#allocation4], 128
    $region29: #{tpu_custom_call.1} parent=1 // pred_fallthru
      _
    %175 = vsyncpa [#allocation3], 1
    %176 = vsyncpa [#allocation6], 1
    %177 = vsyncpa [#allocation4], 1

</llo_original>
